<compile_context>
chip_gen: v7x
topology: tpu7x:2x2x1
jax: 0.10.0
libtpu: 0.0.40
codegen_flags: <defaults>
</compile_context>

<pallas_src>
import numpy as np
import jax
import jax.numpy as jnp
from jax.experimental import pallas as pl
from jax.experimental.pallas import tpu as pltpu

_LANE = 128  # per-bin lane block width (each bin's b*b positions get 128 lanes)


# ----------------------------------------------------------------------------
# Host-side constant operators (pure indexing math, built once per (H, W, bins))
# ----------------------------------------------------------------------------
def _adaptive_pool_matrix(in_size, out_size):
    """Row i averages input positions [floor(i*in/out), ceil((i+1)*in/out))."""
    P = np.zeros((out_size, in_size), dtype=np.float32)
    for i in range(out_size):
        start = (i * in_size) // out_size
        end = -(-((i + 1) * in_size) // out_size)  # ceil
        P[i, start:end] = 1.0 / (end - start)
    return P


def _bilinear_matrix(out_size, in_size):
    """out[i] = sum_j U[i, j] * in[j]   (align_corners=True semantics)."""
    U = np.zeros((out_size, in_size), dtype=np.float32)
    if in_size == 1:
        U[:, 0] = 1.0
        return U
    scale = (in_size - 1) / (out_size - 1) if out_size > 1 else 0.0
    for i in range(out_size):
        src = i * scale
        i0 = min(int(np.floor(src)), in_size - 1)
        i1 = min(i0 + 1, in_size - 1)
        w1 = src - i0
        U[i, i0] += 1.0 - w1
        U[i, i1] += w1
    return U


def _build_spatial_operators(H, W, bins):
    """Pt (HW, nb*128): pooling operator (transposed), one 128-lane block per
    bin.  Ut (nb*128, HW): bilinear upsample operator (transposed), same
    per-bin 128-row blocks.  Padded Pt columns / Ut rows are exactly zero."""
    assert all(b * b <= _LANE for b in bins), bins
    # TODO(synk): bins with b*b > 128 would need wider per-bin lane blocks.
    HW = H * W
    nb = len(bins)
    pt = np.zeros((HW, nb * _LANE), dtype=np.float32)
    ut = np.zeros((nb * _LANE, HW), dtype=np.float32)
    for i, b in enumerate(bins):
        Pb = np.kron(_adaptive_pool_matrix(H, b), _adaptive_pool_matrix(W, b))
        Ub = np.kron(_bilinear_matrix(H, b), _bilinear_matrix(W, b))
        b2 = b * b
        pt[:, i * _LANE:i * _LANE + b2] = Pb.T
        ut[i * _LANE:i * _LANE + b2, :] = Ub.T
    return (jnp.asarray(pt, dtype=jnp.bfloat16),
            jnp.asarray(ut, dtype=jnp.bfloat16))


def _pick_tile(total, align, cap):
    """Largest multiple-of-`align` divisor of `total` that is <= cap, else the
    full extent (a block dim equal to the full array dim is always legal)."""
    for cand in range(min(cap, total), align - 1, -1):
        if cand % align == 0 and total % cand == 0:
            return cand
    return total


def _cparams(dims, vmem_limit_bytes):
    return pltpu.CompilerParams(dimension_semantics=dims,
                                vmem_limit_bytes=vmem_limit_bytes)


# ----------------------------------------------------------------------------
# Kernel A: adaptive average pool for ALL bins (reads x once, NCHW, f32->bf16
# cast in-kernel, f32 MXU accumulation, bf16 output).
# ----------------------------------------------------------------------------
def _pool_kernel(x_ref, pt_ref, pooled_ref):
    pooled_ref[...] = jnp.dot(
        x_ref[...].astype(jnp.bfloat16), pt_ref[...],
        preferred_element_type=jnp.float32).astype(pooled_ref.dtype)


def _pool(x3, pt_all, cin_tile, vmem_limit_bytes):
    N, Cin, HW = x3.shape
    nbL = pt_all.shape[1]
    return pl.pallas_call(
        _pool_kernel,
        out_shape=jax.ShapeDtypeStruct((N, Cin, nbL), jnp.bfloat16),
        grid=(N, Cin // cin_tile),
        in_specs=[
            # x in native NCHW-flattened layout; full-HW last dim (always a
            # legal block dim, lane-dense, no masked tiles).
            pl.BlockSpec((None, cin_tile, HW), lambda n, c: (n, c, 0)),
            # Pt: constant block index -> fetched once, stays VMEM-resident.
            pl.BlockSpec((HW, nbL), lambda n, c: (0, 0)),
        ],
        out_specs=pl.BlockSpec((None, cin_tile, nbL), lambda n, c: (n, c, 0)),
        compiler_params=_cparams(("parallel", "parallel"), vmem_limit_bytes),
    )(x3, pt_all)


# ----------------------------------------------------------------------------
# Kernel B: per-bin 1x1 conv + folded eval-BN + ReLU on the tiny pooled tensor
# (keeps the conv weights out of kernel A's VMEM pipeline).
# ----------------------------------------------------------------------------
def _conv_bn_relu_kernel(pooled_ref, w_ref, scale_ref, shift_ref, yt_ref):
    acc = jnp.dot(w_ref[...], pooled_ref[...],
                  preferred_element_type=jnp.float32)       # (Cout, 128)
    y = jnp.maximum(acc * scale_ref[...] + shift_ref[...], 0.0)
    yt_ref[...] = y.astype(yt_ref.dtype)


def _conv_bn_relu(pooled, w_t, scale, shift, vmem_limit_bytes):
    N, Cin, nbL = pooled.shape
    nb, Cout, _ = w_t.shape
    return pl.pallas_call(
        _conv_bn_relu_kernel,
        out_shape=jax.ShapeDtypeStruct((N, Cout, nbL), jnp.bfloat16),
        # bins outermost so each per-bin weight block is DMA'd once.
        grid=(nb, N),
        in_specs=[
            pl.BlockSpec((None, Cin, _LANE), lambda i, n: (n, 0, i)),
            pl.BlockSpec((None, Cout, Cin), lambda i, n: (i, 0, 0)),
            pl.BlockSpec((None, Cout, 1), lambda i, n: (i, 0, 0)),
            pl.BlockSpec((None, Cout, 1), lambda i, n: (i, 0, 0)),
        ],
        out_specs=pl.BlockSpec((None, Cout, _LANE), lambda i, n: (n, 0, i)),
        compiler_params=_cparams(("parallel", "parallel"), vmem_limit_bytes),
    )(pooled, w_t, scale, shift)


# ----------------------------------------------------------------------------
# Kernel C: bilinear upsample, emitted directly in NCHW (channels on sublanes,
# HW lane-dense), bf16 store.
# ----------------------------------------------------------------------------
def _upsample_kernel(yt_ref, ut_ref, o_ref):
    o_ref[...] = jnp.dot(yt_ref[...], ut_ref[...],
                         preferred_element_type=jnp.float32).astype(o_ref.dtype)


def _upsample(yt, ut_all, HW, cout_tile, vmem_limit_bytes):
    N, Cout, nbL = yt.shape
    nb = nbL // _LANE
    c_tiles = Cout // cout_tile
    return pl.pallas_call(
        _upsample_kernel,
        out_shape=jax.ShapeDtypeStruct((N, nb * Cout, HW), jnp.bfloat16),
        grid=(N, nb, c_tiles),
        in_specs=[
            pl.BlockSpec((None, cout_tile, _LANE), lambda n, i, c: (n, c, i)),
            pl.BlockSpec((_LANE, HW), lambda n, i, c: (i, 0)),
        ],
        # output channel blocks are [bin0: Cout, bin1: Cout, ...] in NCHW.
        out_specs=pl.BlockSpec((None, cout_tile, HW),
                               lambda n, i, c: (n, i * c_tiles + c, 0)),
        compiler_params=_cparams(("parallel", "parallel", "parallel"),
                                 vmem_limit_bytes),
    )(yt, ut_all)


# ----------------------------------------------------------------------------
# Parameters (deterministic synthetic init) and full PPM forward.
# ----------------------------------------------------------------------------
def init_ppm_params(key, in_channels, out_channels, bins):
    # TODO(synk): training-mode BatchNorm (batch statistics) is not modelled;
    # eval-mode BN is folded into a per-channel scale/shift.
    eps = 1e-5
    w_list, sc_list, sh_list = [], [], []
    for i, _b in enumerate(bins):
        k = jax.random.fold_in(key, i)
        w = 0.1 * jax.random.normal(k, (out_channels, in_channels),
                                    dtype=jnp.float32)
        gamma = 1.0 + 0.01 * jnp.arange(out_channels, dtype=jnp.float32)
        beta = 0.02 * jnp.arange(out_channels, dtype=jnp.float32)
        running_mean = jnp.zeros((out_channels,), dtype=jnp.float32)
        running_var = jnp.ones((out_channels,), dtype=jnp.float32)
        scale = gamma / jnp.sqrt(running_var + eps)
        shift = beta - running_mean * scale
        w_list.append(w)                       # (Cout, Cin)
        sc_list.append(scale[:, None])         # (Cout, 1)
        sh_list.append(shift[:, None])         # (Cout, 1)
    return dict(
        w_t=jnp.stack(w_list).astype(jnp.bfloat16),     # (nb, Cout, Cin) bf16
        scale=jnp.stack(sc_list).astype(jnp.float32),   # (nb, Cout, 1)  f32
        shift=jnp.stack(sh_list).astype(jnp.float32),   # (nb, Cout, 1)  f32
    )


def ppm_forward(feats, params, bins, from_layer, to_layer, *,
                cin_tile_cap=256, cout_tile_cap=256,
                vmem_limit_bytes=48 * 1024 * 1024):
    """feats: list of NCHW arrays.  Returns a new list with feats[to_layer]
    replaced by concat([x] + per-bin PPM branches) along the channel axis.
    Tile caps / vmem_limit_bytes can be raised on v5e/v6e (128 MiB VMEM);
    defaults are sized to stay comfortably within v7x's 64 MiB."""
    feats_ = list(feats)
    x = feats_[from_layer]                          # (N, Cin, H, W)
    N, Cin, H, W = x.shape
    HW = H * W
    nb = len(bins)
    Cout = params["w_t"].shape[1]

    pt_all, ut_all = _build_spatial_operators(H, W, bins)

    x3 = x.reshape(N, Cin, HW)                      # free view, NCHW kept
    cin_tile = _pick_tile(Cin, 8, cin_tile_cap)
    cout_tile = _pick_tile(Cout, 8, cout_tile_cap)

    # A) pool all bins (single pass over x, read in NCHW, no wrapper cast).
    pooled = _pool(x3, pt_all, cin_tile, vmem_limit_bytes)
    # B) 1x1 conv + folded BN + ReLU per bin on the tiny pooled tensor.
    yt = _conv_bn_relu(pooled, params["w_t"], params["scale"],
                       params["shift"], vmem_limit_bytes)
    # C) bilinear upsample, NCHW output, bf16 store.
    slab = _upsample(yt, ut_all, HW, cout_tile, vmem_limit_bytes)

    y = slab.reshape(N, nb * Cout, H, W).astype(x.dtype)
    feats_[to_layer] = jnp.concatenate([x, y], axis=1)
    return feats_


# ----------------------------------------------------------------------------
# Pure-JAX reference (same math & bf16 quantization points, no Pallas).
# ----------------------------------------------------------------------------
def _ppm_forward_reference(feats, params, bins, from_layer, to_layer):
    feats_ = list(feats)
    x = feats_[from_layer]
    N, Cin, H, W = x.shape
    HW = H * W
    Cout = params["w_t"].shape[1]

    def q(a):  # bf16 quantization points matching the kernel pipeline
        return a.astype(jnp.bfloat16).astype(jnp.float32)

    xq = q(x.reshape(N, Cin, HW))
    outs = [x]
    for i, b in enumerate(bins):
        P = jnp.asarray(np.kron(_adaptive_pool_matrix(H, b),
                                _adaptive_pool_matrix(W, b)))     # (b2, HW)
        U = jnp.asarray(np.kron(_bilinear_matrix(H, b),
                                _bilinear_matrix(W, b)))          # (HW, b2)
        pooled = q(jnp.einsum("sq,ncq->ncs", q(P), xq))           # (N,Cin,b2)
        w = params["w_t"][i].astype(jnp.float32)                  # (Cout,Cin)
        y = jnp.einsum("dc,ncs->nds", w, pooled)
        y = q(jnp.maximum(y * params["scale"][i] + params["shift"][i], 0.0))
        up = q(jnp.einsum("qs,nds->ndq", q(U), y))                # (N,Cout,HW)
        outs.append(up.reshape(N, Cout, H, W))
    feats_[to_layer] = jnp.concatenate(outs, axis=1)
    return feats_


if __name__ == "__main__":
    key = jax.random.PRNGKey(0)

    N, C_in, H, W = 2, 16, 16, 16
    C_out = 16
    bins = (1, 2, 3, 6)
    from_layer, to_layer = 1, 1

    k0, k1, kp = jax.random.split(key, 3)
    feat0 = jax.random.normal(k0, (N, 8, H // 2, W // 2), dtype=jnp.float32)
    x = jax.random.normal(k1, (N, C_in, H, W), dtype=jnp.float32)
    feats = [feat0, x]

    params = init_ppm_params(kp, C_in, C_out, bins)

    # Small tile caps so both the Cin-tiled pooling axis and the Cout-tiled
    # upsample axis are actually exercised (multiple blocks) at toy shapes.
    out_feats = ppm_forward(feats, params, bins, from_layer, to_layer,
                            cin_tile_cap=8, cout_tile_cap=8)
    result = jax.block_until_ready(out_feats[to_layer])

    expected_channels = C_in + len(bins) * C_out
    assert result.shape == (N, expected_channels, H, W), result.shape
    # untouched layer passes through unchanged
    assert out_feats[0].shape == feat0.shape
    # exact identity passthrough of the original feature map in the concat
    np.testing.assert_array_equal(np.asarray(result[:, :C_in]), np.asarray(x))

    ref_feats = _ppm_forward_reference(feats, params, bins, from_layer,
                                       to_layer)
    ref = jax.block_until_ready(ref_feats[to_layer])
    np.testing.assert_allclose(np.asarray(result), np.asarray(ref),
                               rtol=2e-2, atol=2e-2)

    print("KERNEL_OK")
</pallas_src>

<mosaic_0001>
module attributes {stable_mosaic.version = 11 : i64} {
  func.func @_pool_kernel(%arg0: i32, %arg1: i32, %arg2: memref<1x8x256xf32, #tpu.memory_space<vmem>>, %arg3: memref<256x512xbf16, #tpu.memory_space<vmem>>, %arg4: memref<1x8x512xbf16, #tpu.memory_space<vmem>>) attributes {dimension_semantics = [#tpu.dimension_semantics<parallel>, #tpu.dimension_semantics<parallel>], iteration_bounds = array<i64: 2, 2>, scalar_prefetch = 0 : i64, scratch_operands = 0 : i64, tpu.core_type = #tpu.core_type<tc>, window_params = [{transform_indices = @transform_0, window_bounds = array<i64: 1, 8, 256>}, {pipeline_mode = #tpu.pipeline_mode<synchronous>, transform_indices = @transform_1, window_bounds = array<i64: 256, 512>}, {transform_indices = @transform_2, window_bounds = array<i64: 1, 8, 512>}]} {
    %c0 = arith.constant 0 : index
    %c0_0 = arith.constant 0 : index
    %c0_1 = arith.constant 0 : index
    %0 = vector.load %arg2[%c0, %c0_0, %c0_1] : memref<1x8x256xf32, #tpu.memory_space<vmem>>, vector<1x8x256xf32>
    %1 = vector.shape_cast %0 : vector<1x8x256xf32> to vector<8x256xf32>
    %2 = arith.truncf %1 : vector<8x256xf32> to vector<8x256xbf16>
    %c0_2 = arith.constant 0 : index
    %c0_3 = arith.constant 0 : index
    %3 = vector.load %arg3[%c0_2, %c0_3] : memref<256x512xbf16, #tpu.memory_space<vmem>>, vector<256x512xbf16>
    %cst = arith.constant dense<0.000000e+00> : vector<8x512xf32>
    %4 = tpu.matmul %2, %3, %cst {dimension_numbers = #tpu.dot_dimension_numbers<[1], [0], [0], [1], [0, 0, 1, 1], [], []>} : vector<8x256xbf16>, vector<256x512xbf16>, vector<8x512xf32> -> vector<8x512xf32>
    %5 = arith.truncf %4 : vector<8x512xf32> to vector<8x512xbf16>
    %c0_4 = arith.constant 0 : index
    %c0_5 = arith.constant 0 : index
    %c0_6 = arith.constant 0 : index
    %6 = vector.load %arg4[%c0_4, %c0_5, %c0_6] : memref<1x8x512xbf16, #tpu.memory_space<vmem>>, vector<1x8x512xbf16>
    %7 = vector.shape_cast %6 : vector<1x8x512xbf16> to vector<8x512xbf16>
    %8 = vector.shape_cast %5 : vector<8x512xbf16> to vector<1x8x512xbf16>
    tpu.vector_store %arg4[%c0_4, %c0_5, %c0_6], %8 {strides = array<i32>} : memref<1x8x512xbf16, #tpu.memory_space<vmem>>, vector<1x8x512xbf16>,
    return
  }
  func.func @transform_0(%arg0: i32, %arg1: i32) -> (i32, i32, i32) {
    %c0_i32 = arith.constant 0 : i32
    %c0_i32_0 = arith.constant 0 : i32
    return %arg0, %arg1, %c0_i32 : i32, i32, i32
  }
  func.func @transform_1(%arg0: i32, %arg1: i32) -> (i32, i32) {
    %c0_i32 = arith.constant 0 : i32
    %c0_i32_0 = arith.constant 0 : i32
    %c0_i32_1 = arith.constant 0 : i32
    return %c0_i32, %c0_i32_0 : i32, i32
  }
  func.func @transform_2(%arg0: i32, %arg1: i32) -> (i32, i32, i32) {
    %c0_i32 = arith.constant 0 : i32
    %c0_i32_0 = arith.constant 0 : i32
    return %arg0, %arg1, %c0_i32 : i32, i32, i32
  }
}

</mosaic_0001>

<llo_original>
// kernel: tpu_custom_call.1
$region0: #{tpu_custom_call.1}
  #allocation0 [shape = 'u32[]', space=smem, size = 0x4, offset = 0x4, fixed_abs, tag = 'smem constant byte address 0x4 - core index']
  #allocation1 [shape = 'u32[144,128]{1,0:T(1,128)}', space=vmem, size = 0x12000, scoped, tag = 'internal scratch']
  %s0 = inlined_call_operand.hbm [shape: f32[2,16,256], index: 0, kind: input, shape index: {}]
  %s1 = inlined_call_operand.hbm [shape: bf16[256,512], index: 1, kind: input, shape index: {}]
  %s2 = inlined_call_operand.hbm [shape: bf16[2,16,512], index: 2, kind: output, shape index: {}]
  %s3 = sld [smem:[#allocation0]]
  $region49: #{tpu_custom_call.1} parent=0
    _
  %s5 = ssub.s32 1, %s3
  %s6 = scalar_select 0, %s5, %s3
  $region1: #{tpu_custom_call.1} parent=0
    #allocation2 [shape = 'u8[16384]{0}', space=vmem, size = 0x4000, scoped, tag = 'input window, operand 0']
    #allocation3 [shape = 's32[2]{0}', space=sflag, size = 0x8, scoped, tag = 'scoped memory for tpu_custom_call.1']
    #allocation4 [shape = 's32[2]{0}', space=sflag, size = 0x8, scoped, tag = 'scoped memory for tpu_custom_call.1']
    #allocation5 [shape = 'u8[262144]{0}', space=vmem, size = 0x40000, scoped, tag = 'input window, operand 1, single buffered']
    #allocation6 [shape = 's32[1]{0}', space=sflag, size = 0x4, scoped, tag = 'scoped memory for tpu_custom_call.1']
    #allocation7 [shape = 'u8[16384]{0}', space=vmem, size = 0x4000, scoped, tag = 'output window, operand 0']
    %7 = vsyncpa [#allocation3], 0
    %s8 = scalar_lea.sflag [#allocation3], 1
    %9 = vsyncpa %s8, 0
    %10 = vsyncpa [#allocation6], 0
    %11 = vsyncpa [#allocation4], 0
    %s12 = scalar_lea.sflag [#allocation4], 1
    %13 = vsyncpa %s12, 0
    loop: start=0, step=1, limit=6
    $region2: #{tpu_custom_call.1} parent=1 // loop_pre_header
      _
    $region3: #{tpu_custom_call.1} parent=1 // loop_header
      %s15 = sphi 0, %s19
      %p16 = scmp.ge.s32.totalorder %s15, 6
      %s22 = sphi 0, %s34
      %s23 = sphi 0, %s30
      %s24 = sphi 0, %s22
      %s25 = sphi 0, %s23
      %s26 = sphi 0, %s24
      %s27 = sphi 0, %s25
      %s39 = sphi 0, %s41
      %s42 = sphi 0, %s39
      %s43 = sphi 0, %s42
      %s59 = sphi 0, %s43
      %s63 = sphi 0, %s63
      %s65 = sphi 0, %s63
      %s66 = sphi 0, %s65
      %s80 = sphi 0, %s66
      %s88 = sphi 0, %s90
      %s91 = sphi 0, %s88
      %s92 = sphi 0, %s91
      %s108 = sphi 0, %s92
    $region4: #{tpu_custom_call.1} parent=1 // loop_header_branch
      %18 = sbr.rel (%p16) target = $region8
    $region5: #{tpu_custom_call.1} parent=1 // loop_body
      %s20 = ssub.s32 %s15, 1
      %s21 = ssub.s32 %s15, 2
      %s28 = sadd.s32 1, %s23
      %p29 = scmp.ge.s32.totalorder %s28, 2
      %s30 = scalar_select %p29, 0, %s28
      %s31 = sadd.s32 1, %s22
      %s32 = scalar_select %p29, %s31, %s22
      %p33 = scmp.ge.s32.totalorder %s32, 2
      %s34 = scalar_select %p33, 0, %s32
      %s35 = ssub.s32 %s22, %s34
      %s36 = ssub.s32 %s23, %s30
      %s37 = sor.u32 %s35, %s36
      %p38 = scmp.eq.s32.totalorder %s37, 0
      %s40 = sadd.s32 %s39, 1
      %s41 = scalar_select %p38, %s39, %s40
      %p44 = pneg %p38
      %p45 = scmp.eq.s32.totalorder %s15, 3
      %p46 = por %p44, %p45
      %p47 = scmp.ne.s32.totalorder %s39, %s42
      %p48 = scmp.eq.s32.totalorder %s15, 0
      %p49 = por %p47, %p48
      %p50 = scmp.ne.s32.totalorder %s39, %s42
      %p51 = scmp.eq.s32.totalorder %s20, 3
      %p52 = por %p50, %p51
      %p53 = scmp.ne.s32.totalorder %s42, %s43
      %p54 = scmp.eq.s32.totalorder %s20, 0
      %p55 = por %p53, %p54
      %p56 = scmp.ne.s32.totalorder %s42, %s43
      %p57 = scmp.eq.s32.totalorder %s21, 3
      %p58 = por %p56, %p57
      %p60 = scmp.ne.s32.totalorder %s43, %s59
      %p61 = scmp.eq.s32.totalorder %s21, 0
      %p62 = por %p60, %p61
      %s64 = sadd.s32 %s63, 1
      %p67 = scmp.eq.s32.totalorder %s15, 3
      %p68 = scmp.ne.s32.totalorder %s63, %s65
      %p69 = scmp.eq.s32.totalorder %s15, 0
      %p70 = por %p68, %p69
      %p71 = scmp.ne.s32.totalorder %s63, %s65
      %p72 = scmp.eq.s32.totalorder %s20, 3
      %p73 = por %p71, %p72
      %p74 = scmp.ne.s32.totalorder %s65, %s66
      %p75 = scmp.eq.s32.totalorder %s20, 0
      %p76 = por %p74, %p75
      %p77 = scmp.ne.s32.totalorder %s65, %s66
      %p78 = scmp.eq.s32.totalorder %s21, 3
      %p79 = por %p77, %p78
      %p81 = scmp.ne.s32.totalorder %s66, %s80
      %p82 = scmp.eq.s32.totalorder %s21, 0
      %p83 = por %p81, %p82
      %s84 = ssub.s32 %s22, %s34
      %s85 = ssub.s32 %s23, %s30
      %s86 = sor.u32 %s84, %s85
      %p87 = scmp.eq.s32.totalorder %s86, 0
      %s89 = sadd.s32 %s88, 1
      %s90 = scalar_select %p87, %s88, %s89
      %p93 = pneg %p87
      %p94 = scmp.eq.s32.totalorder %s15, 3
      %p95 = por %p93, %p94
      %p96 = scmp.ne.s32.totalorder %s88, %s91
      %p97 = scmp.eq.s32.totalorder %s15, 0
      %p98 = por %p96, %p97
      %p99 = scmp.ne.s32.totalorder %s88, %s91
      %p100 = scmp.eq.s32.totalorder %s20, 3
      %p101 = por %p99, %p100
      %p102 = scmp.ne.s32.totalorder %s91, %s92
      %p103 = scmp.eq.s32.totalorder %s20, 0
      %p104 = por %p102, %p103
      %p105 = scmp.ne.s32.totalorder %s91, %s92
      %p106 = scmp.eq.s32.totalorder %s21, 3
      %p107 = por %p105, %p106
      %p109 = scmp.ne.s32.totalorder %s92, %s108
      %p110 = scmp.eq.s32.totalorder %s21, 0
      %p111 = por %p109, %p110
      %p112 = scmp.le.s32.totalorder 1, %s15
      %p113 = scmp.lt.s32.totalorder %s15, 5
      %p114 = pnand %p112, %p113
      %p115 = pneg %p114
      // Predicated region
      $region9: #{tpu_custom_call.1} parent=5 // pred_check
        _
      $region10: #{tpu_custom_call.1} parent=5 // pred_check_branch
        %117 = sbr.rel (%p114) target = $region12
      $region11: #{tpu_custom_call.1} parent=5 // pred_region
        %s118 = ssub.s32 %s15, 1
        // Predicated region
        $region13: #{tpu_custom_call.1} parent=11 // pred_check
          %p119 = pneg %p76
        $region14: #{tpu_custom_call.1} parent=11 // pred_check_branch
          %121 = sbr.rel (%p119) target = $region16
        $region15: #{tpu_custom_call.1} parent=11 // pred_region
          %s123 = ssub.s32 8192, 8192
          %124 = vsyncadd [#allocation6], %s123
          %s125 = sshll.u32 [#allocation5], 4
          %s126 = int_to_ptr.vmem [resolvable:$true] %s125
          %131 = dma.hbm_to_vmem [thread:$0]  %s1, 8192, %s126, [#allocation6], 256, 256, 16
        $region16: #{tpu_custom_call.1} parent=11 // pred_fallthru
          _
      $region12: #{tpu_custom_call.1} parent=5 // pred_fallthru
        _
      %p132 = scmp.lt.s32.totalorder %s15, 4
      // Predicated region
      $region17: #{tpu_custom_call.1} parent=5 // pred_check
        %p133 = pneg %p132
      $region18: #{tpu_custom_call.1} parent=5 // pred_check_branch
        %135 = sbr.rel (%p133) target = $region20
      $region19: #{tpu_custom_call.1} parent=5 // pred_region
        // Predicated region
        $region21: #{tpu_custom_call.1} parent=19 // pred_check
          %p136 = pneg %p49
        $region22: #{tpu_custom_call.1} parent=19 // pred_check_branch
          %138 = sbr.rel (%p136) target = $region24
        $region23: #{tpu_custom_call.1} parent=19 // pred_region
          %s139 = sand.u32 %s39, 1
          %s140 = scalar_lea.sflag [#allocation3], %s139
          %s141 = sand.u32 %s39, 1
          %s142 = smul.addr %s141, 16
          %s143 = scalar_lea.vmem [#allocation2], %s142
          %s145 = ssub.s32 256, 256
          %146 = vsyncadd %s140, %s145
          %s147 = smul.addr %s23, 2
          %s148 = smul.addr %s22, 4
          %s149 = sadd.s32 %s147, %s148
          %s150 = smul.addr %s149, 128
          %s151 = scalar_lea.hbm %s0, %s150
          %s153 = sshll.u32 %s143, 4
          %s154 = int_to_ptr.vmem [resolvable:$true] %s153
          %156 = dma.hbm_to_vmem [thread:$0]  %s151, 256, %s154, %s140
        $region24: #{tpu_custom_call.1} parent=19 // pred_fallthru
          _
      $region20: #{tpu_custom_call.1} parent=5 // pred_fallthru
        _
      %p157 = scmp.le.s32.totalorder 1, %s15
      %p158 = scmp.lt.s32.totalorder %s15, 5
      %p159 = pnand %p157, %p158
      %p160 = pneg %p159
      // Predicated region
      $region25: #{tpu_custom_call.1} parent=5 // pred_check
        _
      $region26: #{tpu_custom_call.1} parent=5 // pred_check_branch
        %162 = sbr.rel (%p159) target = $region28
      $region27: #{tpu_custom_call.1} parent=5 // pred_region
        %s163 = ssub.s32 %s15, 1
        %s164 = sand.u32 %s42, 1
        %s165 = scalar_lea.sflag [#allocation3], %s164
        %s166 = sand.u32 %s42, 1
        %s167 = smul.addr %s166, 16
        %s168 = scalar_lea.vmem [#allocation2], %s167
        // Predicated region
        $region29: #{tpu_custom_call.1} parent=27 // pred_check
          %p169 = pneg %p55
        $region30: #{tpu_custom_call.1} parent=27 // pred_check_branch
          %171 = sbr.rel (%p169) target = $region32
        $region31: #{tpu_custom_call.1} parent=27 // pred_region
          %172 = dma.done %s165, 256
        $region32: #{tpu_custom_call.1} parent=27 // pred_fallthru
          _
        // Predicated region
        $region33: #{tpu_custom_call.1} parent=27 // pred_check
          %p173 = pneg %p76
        $region34: #{tpu_custom_call.1} parent=27 // pred_check_branch
          %175 = sbr.rel (%p173) target = $region36
        $region35: #{tpu_custom_call.1} parent=27 // pred_region
          %176 = dma.done [#allocation6], 8192
        $region36: #{tpu_custom_call.1} parent=27 // pred_fallthru
          _
        %s177 = sand.u32 %s42, 1
        %s178 = scalar_lea.sflag [#allocation3], %s177
        %s179 = sand.u32 %s42, 1
        %s180 = smul.addr %s179, 16
        %s181 = scalar_lea.vmem [#allocation2], %s180
        %p182 = pneg %p55
        %p183 = pneg %p52
        %p184 = pneg %p76
        %p185 = pneg %p73
        %p186 = pneg %p104
        %p187 = pneg %p101
        %s188 = sand.u32 %s91, 1
        %s189 = scalar_lea.sflag [#allocation4], %s188
        %s190 = sand.u32 %s91, 1
        %s191 = smul.addr %s190, 16
        %s192 = scalar_lea.vmem [#allocation7], %s191
        %v193 = vld [vmem:[%s168] sm:$0xff]
        %v194 = vld [vmem:[%s168 + $0x8] sm:$0xff]
        %v195 = vpack.c.bf16 %v193, %v193
        %v196 = vpack.c.bf16 %v194, %v194
        %v197 = vld [vmem:[#allocation5] sm:$0xff]
        %v198 = vld [vmem:[#allocation5 + $0x8] sm:$0xff]
        %v199 = vld [vmem:[#allocation5 + $0x10] sm:$0xff]
        %v200 = vld [vmem:[#allocation5 + $0x18] sm:$0xff]
        %v201 = vld [vmem:[#allocation5 + $0x20] sm:$0xff]
        %v202 = vld [vmem:[#allocation5 + $0x28] sm:$0xff]
        %v203 = vld [vmem:[#allocation5 + $0x30] sm:$0xff]
        %v204 = vld [vmem:[#allocation5 + $0x38] sm:$0xff]
        %v205 = vld [vmem:[#allocation5 + $0x40] sm:$0xff]
        %v206 = vld [vmem:[#allocation5 + $0x48] sm:$0xff]
        %v207 = vld [vmem:[#allocation5 + $0x50] sm:$0xff]
        %v208 = vld [vmem:[#allocation5 + $0x58] sm:$0xff]
        %v209 = vld [vmem:[#allocation5 + $0x60] sm:$0xff]
        %v210 = vld [vmem:[#allocation5 + $0x68] sm:$0xff]
        %v211 = vld [vmem:[#allocation5 + $0x70] sm:$0xff]
        %v212 = vld [vmem:[#allocation5 + $0x78] sm:$0xff]
        %v213 = vld [vmem:[#allocation5 + $0x80] sm:$0xff]
        %v214 = vld [vmem:[#allocation5 + $0x88] sm:$0xff]
        %v215 = vld [vmem:[#allocation5 + $0x90] sm:$0xff]
        %v216 = vld [vmem:[#allocation5 + $0x98] sm:$0xff]
        %v217 = vld [vmem:[#allocation5 + $0xa0] sm:$0xff]
        %v218 = vld [vmem:[#allocation5 + $0xa8] sm:$0xff]
        %v219 = vld [vmem:[#allocation5 + $0xb0] sm:$0xff]
        %v220 = vld [vmem:[#allocation5 + $0xb8] sm:$0xff]
        %v221 = vld [vmem:[#allocation5 + $0xc0] sm:$0xff]
        %v222 = vld [vmem:[#allocation5 + $0xc8] sm:$0xff]
        %v223 = vld [vmem:[#allocation5 + $0xd0] sm:$0xff]
        %v224 = vld [vmem:[#allocation5 + $0xd8] sm:$0xff]
        %v225 = vld [vmem:[#allocation5 + $0xe0] sm:$0xff]
        %v226 = vld [vmem:[#allocation5 + $0xe8] sm:$0xff]
        %v227 = vld [vmem:[#allocation5 + $0xf0] sm:$0xff]
        %v228 = vld [vmem:[#allocation5 + $0xf8] sm:$0xff]
        %v229 = vld [vmem:[#allocation5 + $0x100] sm:$0xff]
        %v230 = vld [vmem:[#allocation5 + $0x108] sm:$0xff]
        %v231 = vld [vmem:[#allocation5 + $0x110] sm:$0xff]
        %v232 = vld [vmem:[#allocation5 + $0x118] sm:$0xff]
        %v233 = vld [vmem:[#allocation5 + $0x120] sm:$0xff]
        %v234 = vld [vmem:[#allocation5 + $0x128] sm:$0xff]
        %v235 = vld [vmem:[#allocation5 + $0x130] sm:$0xff]
        %v236 = vld [vmem:[#allocation5 + $0x138] sm:$0xff]
        %v237 = vld [vmem:[#allocation5 + $0x140] sm:$0xff]
        %v238 = vld [vmem:[#allocation5 + $0x148] sm:$0xff]
        %v239 = vld [vmem:[#allocation5 + $0x150] sm:$0xff]
        %v240 = vld [vmem:[#allocation5 + $0x158] sm:$0xff]
        %v241 = vld [vmem:[#allocation5 + $0x160] sm:$0xff]
        %v242 = vld [vmem:[#allocation5 + $0x168] sm:$0xff]
        %v243 = vld [vmem:[#allocation5 + $0x170] sm:$0xff]
        %v244 = vld [vmem:[#allocation5 + $0x178] sm:$0xff]
        %v245 = vld [vmem:[#allocation5 + $0x180] sm:$0xff]
        %v246 = vld [vmem:[#allocation5 + $0x188] sm:$0xff]
        %v247 = vld [vmem:[#allocation5 + $0x190] sm:$0xff]
        %v248 = vld [vmem:[#allocation5 + $0x198] sm:$0xff]
        %v249 = vld [vmem:[#allocation5 + $0x1a0] sm:$0xff]
        %v250 = vld [vmem:[#allocation5 + $0x1a8] sm:$0xff]
        %v251 = vld [vmem:[#allocation5 + $0x1b0] sm:$0xff]
        %v252 = vld [vmem:[#allocation5 + $0x1b8] sm:$0xff]
        %v253 = vld [vmem:[#allocation5 + $0x1c0] sm:$0xff]
        %v254 = vld [vmem:[#allocation5 + $0x1c8] sm:$0xff]
        %v255 = vld [vmem:[#allocation5 + $0x1d0] sm:$0xff]
        %v256 = vld [vmem:[#allocation5 + $0x1d8] sm:$0xff]
        %v257 = vld [vmem:[#allocation5 + $0x1e0] sm:$0xff]
        %v258 = vld [vmem:[#allocation5 + $0x1e8] sm:$0xff]
        %v259 = vld [vmem:[#allocation5 + $0x1f0] sm:$0xff]
        %v260 = vld [vmem:[#allocation5 + $0x1f8] sm:$0xff]
        %v325 = vunpack.c.l.b16 %v197
        %v326 = vunpack.c.h.b16 %v197
        %v327 = vunpack.c.l.b16 %v198
        %v328 = vunpack.c.h.b16 %v198
        %v329 = vunpack.c.l.b16 %v199
        %v330 = vunpack.c.h.b16 %v199
        %v331 = vunpack.c.l.b16 %v200
        %v332 = vunpack.c.h.b16 %v200
        %v333 = vunpack.c.l.b16 %v201
        %v334 = vunpack.c.h.b16 %v201
        %v335 = vunpack.c.l.b16 %v202
        %v336 = vunpack.c.h.b16 %v202
        %v337 = vunpack.c.l.b16 %v203
        %v338 = vunpack.c.h.b16 %v203
        %v339 = vunpack.c.l.b16 %v204
        %v340 = vunpack.c.h.b16 %v204
        %v341 = vunpack.c.l.b16 %v205
        %v342 = vunpack.c.h.b16 %v205
        %v343 = vunpack.c.l.b16 %v206
        %v344 = vunpack.c.h.b16 %v206
        %v345 = vunpack.c.l.b16 %v207
        %v346 = vunpack.c.h.b16 %v207
        %v347 = vunpack.c.l.b16 %v208
        %v348 = vunpack.c.h.b16 %v208
        %v349 = vunpack.c.l.b16 %v209
        %v350 = vunpack.c.h.b16 %v209
        %v351 = vunpack.c.l.b16 %v210
        %v352 = vunpack.c.h.b16 %v210
        %v353 = vunpack.c.l.b16 %v211
        %v354 = vunpack.c.h.b16 %v211
        %v355 = vunpack.c.l.b16 %v212
        %v356 = vunpack.c.h.b16 %v212
        %v357 = vunpack.c.l.b16 %v213
        %v358 = vunpack.c.h.b16 %v213
        %v359 = vunpack.c.l.b16 %v214
        %v360 = vunpack.c.h.b16 %v214
        %v361 = vunpack.c.l.b16 %v215
        %v362 = vunpack.c.h.b16 %v215
        %v363 = vunpack.c.l.b16 %v216
        %v364 = vunpack.c.h.b16 %v216
        %v365 = vunpack.c.l.b16 %v217
        %v366 = vunpack.c.h.b16 %v217
        %v367 = vunpack.c.l.b16 %v218
        %v368 = vunpack.c.h.b16 %v218
        %v369 = vunpack.c.l.b16 %v219
        %v370 = vunpack.c.h.b16 %v219
        %v371 = vunpack.c.l.b16 %v220
        %v372 = vunpack.c.h.b16 %v220
        %v373 = vunpack.c.l.b16 %v221
        %v374 = vunpack.c.h.b16 %v221
        %v375 = vunpack.c.l.b16 %v222
        %v376 = vunpack.c.h.b16 %v222
        %v377 = vunpack.c.l.b16 %v223
        %v378 = vunpack.c.h.b16 %v223
        %v379 = vunpack.c.l.b16 %v224
        %v380 = vunpack.c.h.b16 %v224
        %v381 = vunpack.c.l.b16 %v225
        %v382 = vunpack.c.h.b16 %v225
        %v383 = vunpack.c.l.b16 %v226
        %v384 = vunpack.c.h.b16 %v226
        %v385 = vunpack.c.l.b16 %v227
        %v386 = vunpack.c.h.b16 %v227
        %v387 = vunpack.c.l.b16 %v228
        %v388 = vunpack.c.h.b16 %v228
        %v389 = vunpack.c.l.b16 %v229
        %v390 = vunpack.c.h.b16 %v229
        %v391 = vunpack.c.l.b16 %v230
        %v392 = vunpack.c.h.b16 %v230
        %v393 = vunpack.c.l.b16 %v231
        %v394 = vunpack.c.h.b16 %v231
        %v395 = vunpack.c.l.b16 %v232
        %v396 = vunpack.c.h.b16 %v232
        %v397 = vunpack.c.l.b16 %v233
        %v398 = vunpack.c.h.b16 %v233
        %v399 = vunpack.c.l.b16 %v234
        %v400 = vunpack.c.h.b16 %v234
        %v401 = vunpack.c.l.b16 %v235
        %v402 = vunpack.c.h.b16 %v235
        %v403 = vunpack.c.l.b16 %v236
        %v404 = vunpack.c.h.b16 %v236
        %v405 = vunpack.c.l.b16 %v237
        %v406 = vunpack.c.h.b16 %v237
        %v407 = vunpack.c.l.b16 %v238
        %v408 = vunpack.c.h.b16 %v238
        %v409 = vunpack.c.l.b16 %v239
        %v410 = vunpack.c.h.b16 %v239
        %v411 = vunpack.c.l.b16 %v240
        %v412 = vunpack.c.h.b16 %v240
        %v413 = vunpack.c.l.b16 %v241
        %v414 = vunpack.c.h.b16 %v241
        %v415 = vunpack.c.l.b16 %v242
        %v416 = vunpack.c.h.b16 %v242
        %v417 = vunpack.c.l.b16 %v243
        %v418 = vunpack.c.h.b16 %v243
        %v419 = vunpack.c.l.b16 %v244
        %v420 = vunpack.c.h.b16 %v244
        %v421 = vunpack.c.l.b16 %v245
        %v422 = vunpack.c.h.b16 %v245
        %v423 = vunpack.c.l.b16 %v246
        %v424 = vunpack.c.h.b16 %v246
        %v425 = vunpack.c.l.b16 %v247
        %v426 = vunpack.c.h.b16 %v247
        %v427 = vunpack.c.l.b16 %v248
        %v428 = vunpack.c.h.b16 %v248
        %v429 = vunpack.c.l.b16 %v249
        %v430 = vunpack.c.h.b16 %v249
        %v431 = vunpack.c.l.b16 %v250
        %v432 = vunpack.c.h.b16 %v250
        %v433 = vunpack.c.l.b16 %v251
        %v434 = vunpack.c.h.b16 %v251
        %v435 = vunpack.c.l.b16 %v252
        %v436 = vunpack.c.h.b16 %v252
        %v437 = vunpack.c.l.b16 %v253
        %v438 = vunpack.c.h.b16 %v253
        %v439 = vunpack.c.l.b16 %v254
        %v440 = vunpack.c.h.b16 %v254
        %v441 = vunpack.c.l.b16 %v255
        %v442 = vunpack.c.h.b16 %v255
        %v443 = vunpack.c.l.b16 %v256
        %v444 = vunpack.c.h.b16 %v256
        %v445 = vunpack.c.l.b16 %v257
        %v446 = vunpack.c.h.b16 %v257
        %v447 = vunpack.c.l.b16 %v258
        %v448 = vunpack.c.h.b16 %v258
        %v449 = vunpack.c.l.b16 %v259
        %v450 = vunpack.c.h.b16 %v259
        %v451 = vunpack.c.l.b16 %v260
        %v452 = vunpack.c.h.b16 %v260
        %v453 = vpack.c.b16 %v329, %v325
        %v454 = vpack.c.b16 %v330, %v326
        %v455 = vpack.c.b16 %v331, %v327
        %v456 = vpack.c.b16 %v332, %v328
        %v457 = vpack.c.b16 %v337, %v333
        %v458 = vpack.c.b16 %v338, %v334
        %v459 = vpack.c.b16 %v339, %v335
        %v460 = vpack.c.b16 %v340, %v336
        %v461 = vpack.c.b16 %v345, %v341
        %v462 = vpack.c.b16 %v346, %v342
        %v463 = vpack.c.b16 %v347, %v343
        %v464 = vpack.c.b16 %v348, %v344
        %v465 = vpack.c.b16 %v353, %v349
        %v466 = vpack.c.b16 %v354, %v350
        %v467 = vpack.c.b16 %v355, %v351
        %v468 = vpack.c.b16 %v356, %v352
        %v469 = vpack.c.b16 %v361, %v357
        %v470 = vpack.c.b16 %v362, %v358
        %v471 = vpack.c.b16 %v363, %v359
        %v472 = vpack.c.b16 %v364, %v360
        %v473 = vpack.c.b16 %v369, %v365
        %v474 = vpack.c.b16 %v370, %v366
        %v475 = vpack.c.b16 %v371, %v367
        %v476 = vpack.c.b16 %v372, %v368
        %v477 = vpack.c.b16 %v377, %v373
        %v478 = vpack.c.b16 %v378, %v374
        %v479 = vpack.c.b16 %v379, %v375
        %v480 = vpack.c.b16 %v380, %v376
        %v481 = vpack.c.b16 %v385, %v381
        %v482 = vpack.c.b16 %v386, %v382
        %v483 = vpack.c.b16 %v387, %v383
        %v484 = vpack.c.b16 %v388, %v384
        %v485 = vpack.c.b16 %v393, %v389
        %v486 = vpack.c.b16 %v394, %v390
        %v487 = vpack.c.b16 %v395, %v391
        %v488 = vpack.c.b16 %v396, %v392
        %v489 = vpack.c.b16 %v401, %v397
        %v490 = vpack.c.b16 %v402, %v398
        %v491 = vpack.c.b16 %v403, %v399
        %v492 = vpack.c.b16 %v404, %v400
        %v493 = vpack.c.b16 %v409, %v405
        %v494 = vpack.c.b16 %v410, %v406
        %v495 = vpack.c.b16 %v411, %v407
        %v496 = vpack.c.b16 %v412, %v408
        %v497 = vpack.c.b16 %v417, %v413
        %v498 = vpack.c.b16 %v418, %v414
        %v499 = vpack.c.b16 %v419, %v415
        %v500 = vpack.c.b16 %v420, %v416
        %v501 = vpack.c.b16 %v425, %v421
        %v502 = vpack.c.b16 %v426, %v422
        %v503 = vpack.c.b16 %v427, %v423
        %v504 = vpack.c.b16 %v428, %v424
        %v505 = vpack.c.b16 %v433, %v429
        %v506 = vpack.c.b16 %v434, %v430
        %v507 = vpack.c.b16 %v435, %v431
        %v508 = vpack.c.b16 %v436, %v432
        %v509 = vpack.c.b16 %v441, %v437
        %v510 = vpack.c.b16 %v442, %v438
        %v511 = vpack.c.b16 %v443, %v439
        %v512 = vpack.c.b16 %v444, %v440
        %v513 = vpack.c.b16 %v449, %v445
        %v514 = vpack.c.b16 %v450, %v446
        %v515 = vpack.c.b16 %v451, %v447
        %v516 = vpack.c.b16 %v452, %v448
        %581 = vmatprep.subr.bf16.mxu0 %v454
        %582 = vmatpush1.bf16.msra.mxu0 %v453
        %583 = vmatprep.subr.bf16.mxu0 %v458
        %584 = vmatpush1.bf16.msra.mxu0 %v457
        %585 = vmatprep.subr.bf16.mxu0 %v462
        %586 = vmatpush1.bf16.msra.mxu0 %v461
        %587 = vmatprep.subr.bf16.mxu0 %v466
        %588 = vmatpush1.bf16.msra.mxu0 %v465
        %589 = vmatprep.subr.bf16.mxu0 %v470
        %590 = vmatpush1.bf16.msra.mxu0 %v469
        %591 = vmatprep.subr.bf16.mxu0 %v474
        %592 = vmatpush1.bf16.msra.mxu0 %v473
        %593 = vmatprep.subr.bf16.mxu0 %v478
        %594 = vmatpush1.bf16.msra.mxu0 %v477
        %595 = vmatprep.subr.bf16.mxu0 %v482
        %596 = vmatpush1.bf16.msra.mxu0 %v481
        %597 = vmatprep.subr.bf16.mxu0 %v486
        %598 = vmatpush1.bf16.msra.mxu0 %v485
        %599 = vmatprep.subr.bf16.mxu0 %v490
        %600 = vmatpush1.bf16.msra.mxu0 %v489
        %601 = vmatprep.subr.bf16.mxu0 %v494
        %602 = vmatpush1.bf16.msra.mxu0 %v493
        %603 = vmatprep.subr.bf16.mxu0 %v498
        %604 = vmatpush1.bf16.msra.mxu0 %v497
        %605 = vmatprep.subr.bf16.mxu0 %v502
        %606 = vmatpush1.bf16.msra.mxu0 %v501
        %607 = vmatprep.subr.bf16.mxu0 %v506
        %608 = vmatpush1.bf16.msra.mxu0 %v505
        %609 = vmatprep.subr.bf16.mxu0 %v510
        %610 = vmatpush1.bf16.msra.mxu0 %v509
        %611 = vmatprep.subr.bf16.mxu0 %v514
        %612 = vmatpush1.bf16.msra.mxu0 %v513
        %613 = vmatprep.mubr.bf16.mxu0 %v196
        %614 = vmatmul.mubr.bf16.gmra.mrb[0].mxu0 %v195
        %v615 = vpop.f32.mrb[0].mxu0
        %v616 = vadd.f32 0.0, %v615
        %v617 = vpop.f32.mrb[0].mxu0
        %v618 = vadd.f32 0.0, %v617
        %v619 = vpop.f32.mrb[0].mxu0
        %v620 = vpop.f32.mrb[0].mxu0
        %621 = vdwg.mxu0
        %622 = vmatprep.subr.bf16.mxu0 %v456
        %623 = vmatpush1.bf16.msra.mxu0 %v455
        %624 = vmatprep.subr.bf16.mxu0 %v460
        %625 = vmatpush1.bf16.msra.mxu0 %v459
        %626 = vmatprep.subr.bf16.mxu0 %v464
        %627 = vmatpush1.bf16.msra.mxu0 %v463
        %628 = vmatprep.subr.bf16.mxu0 %v468
        %629 = vmatpush1.bf16.msra.mxu0 %v467
        %630 = vmatprep.subr.bf16.mxu0 %v472
        %631 = vmatpush1.bf16.msra.mxu0 %v471
        %632 = vmatprep.subr.bf16.mxu0 %v476
        %633 = vmatpush1.bf16.msra.mxu0 %v475
        %634 = vmatprep.subr.bf16.mxu0 %v480
        %635 = vmatpush1.bf16.msra.mxu0 %v479
        %636 = vmatprep.subr.bf16.mxu0 %v484
        %637 = vmatpush1.bf16.msra.mxu0 %v483
        %638 = vmatprep.subr.bf16.mxu0 %v488
        %639 = vmatpush1.bf16.msra.mxu0 %v487
        %640 = vmatprep.subr.bf16.mxu0 %v492
        %641 = vmatpush1.bf16.msra.mxu0 %v491
        %642 = vmatprep.subr.bf16.mxu0 %v496
        %643 = vmatpush1.bf16.msra.mxu0 %v495
        %644 = vmatprep.subr.bf16.mxu0 %v500
        %645 = vmatpush1.bf16.msra.mxu0 %v499
        %646 = vmatprep.subr.bf16.mxu0 %v504
        %647 = vmatpush1.bf16.msra.mxu0 %v503
        %648 = vmatprep.subr.bf16.mxu0 %v508
        %649 = vmatpush1.bf16.msra.mxu0 %v507
        %650 = vmatprep.subr.bf16.mxu0 %v512
        %651 = vmatpush1.bf16.msra.mxu0 %v511
        %652 = vmatprep.subr.bf16.mxu0 %v516
        %653 = vmatpush1.bf16.msra.mxu0 %v515
        %654 = vmatprep.mubr.bf16.mxu0 %v196
        %655 = vmatmul.mubr.bf16.gmra.mrb[0].mxu0 %v195
        %v656 = vpop.f32.mrb[0].mxu0
        %v657 = vadd.f32 0.0, %v656
        %v658 = vpop.f32.mrb[0].mxu0
        %v659 = vadd.f32 0.0, %v658
        %v660 = vpop.f32.mrb[0].mxu0
        %v661 = vpop.f32.mrb[0].mxu0
        %662 = vdwg.mxu0
        %v663 = vpack.c.bf16 %v616, %v616
        %v664 = vpack.c.bf16 %v618, %v618
        %v665 = vpack.c.bf16 %v657, %v657
        %v666 = vpack.c.bf16 %v659, %v659
        %v671 = vunpack.c.l.b16 %v663
        %v672 = vunpack.c.l.b16 %v664
        %v673 = vunpack.c.l.b16 %v665
        %v674 = vunpack.c.l.b16 %v666
        %v675 = vpack.c.b16 %v672, %v671
        %v676 = vpack.c.b16 %v674, %v673
        %679 = vst [vmem:[%s192] sm:$0xff] %v675
        %680 = vst [vmem:[%s192 + $0x8] sm:$0xff] %v676
        %s681 = sand.u32 %s91, 1
        %s682 = scalar_lea.sflag [#allocation4], %s681
        %s683 = sand.u32 %s91, 1
        %s684 = smul.addr %s683, 16
        %s685 = scalar_lea.vmem [#allocation7], %s684
        // Predicated region
        $region37: #{tpu_custom_call.1} parent=27 // pred_check
          %p686 = pneg %p101
        $region38: #{tpu_custom_call.1} parent=27 // pred_check_branch
          %688 = sbr.rel (%p686) target = $region40
        $region39: #{tpu_custom_call.1} parent=27 // pred_region
          %s690 = ssub.s32 256, 256
          %691 = vsyncadd %s682, %s690
          %s692 = smul.addr %s25, 4
          %s693 = smul.addr %s24, 8
          %s694 = sadd.s32 %s692, %s693
          %s695 = smul.addr %s694, 64
          %s696 = scalar_lea.hbm %s2, %s695
          %s698 = sshll.u32 %s685, 4
          %s699 = int_to_ptr.vmem [resolvable:$true] %s698
          %701 = dma.vmem_to_hbm [thread:$0]  %s699, 256, %s696, %s682
        $region40: #{tpu_custom_call.1} parent=27 // pred_fallthru
          _
      $region28: #{tpu_custom_call.1} parent=5 // pred_fallthru
        _
      %p702 = scmp.le.s32.totalorder 2, %s15
      // Predicated region
      $region41: #{tpu_custom_call.1} parent=5 // pred_check
        %p703 = pneg %p702
      $region42: #{tpu_custom_call.1} parent=5 // pred_check_branch
        %705 = sbr.rel (%p703) target = $region44
      $region43: #{tpu_custom_call.1} parent=5 // pred_region
        %s706 = ssub.s32 %s15, 2
        // Predicated region
        $region45: #{tpu_custom_call.1} parent=43 // pred_check
          %p707 = pneg %p107
        $region46: #{tpu_custom_call.1} parent=43 // pred_check_branch
          %709 = sbr.rel (%p707) target = $region48
        $region47: #{tpu_custom_call.1} parent=43 // pred_region
          %s710 = sand.u32 %s92, 1
          %s711 = scalar_lea.sflag [#allocation4], %s710
          %s712 = sand.u32 %s92, 1
          %s713 = smul.addr %s712, 16
          %s714 = scalar_lea.vmem [#allocation7], %s713
          %715 = dma.done %s711, 256
        $region48: #{tpu_custom_call.1} parent=43 // pred_fallthru
          _
      $region44: #{tpu_custom_call.1} parent=5 // pred_fallthru
        _
    $region6: #{tpu_custom_call.1} parent=1 // loop_footer
      %s19 = sadd.s32 1, %s15
    $region7: #{tpu_custom_call.1} parent=1 // loop_footer_branch
      %14 = sbr.rel target = $region3
    $region8: #{tpu_custom_call.1} parent=1 // loop_exit
      _
    %716 = vsyncpa [#allocation3], 1
    %s717 = scalar_lea.sflag [#allocation3], 1
    %718 = vsyncpa %s717, 1
    %719 = vsyncpa [#allocation6], 1
    %720 = vsyncpa [#allocation4], 1
    %s721 = scalar_lea.sflag [#allocation4], 1
    %722 = vsyncpa %s721, 1

</llo_original>
